<compile_context>
chip_gen: v7x
topology: tpu7x:2x2x1
jax: 0.10.0
libtpu: 0.0.40
codegen_flags: <defaults>
</compile_context>

<pallas_src>
import functools

import jax
import jax.numpy as jnp
from jax.experimental import pallas as pl
from jax.experimental.pallas import tpu as pltpu

EPS = 1e-5
MOMENTUM = 0.1
LANE = 128
C_PAD_MULTIPLE = 256            # feed the 2x256^2 MXU N-dim (v6e/v7x)
VMEM_TILE_BUDGET = 24 << 20     # tile-selection budget; leaves headroom on v7x
VMEM_HEADROOM = 8 << 20         # compiler / internal scratch headroom


def _round_up(x, m):
    return (x + m - 1) // m * m


def _pick_div_tile(extent, candidates, fits):
    """Largest candidate dividing `extent` that satisfies `fits`; else full extent."""
    for t in candidates:
        if t <= extent and extent % t == 0 and fits(t):
            return t
    return extent  # full-extent block is always a legal BlockSpec shape


def _vmem_limit(needed_bytes):
    # Derived from actual buffer residency + headroom instead of a hard-coded
    # 48 MiB (review: v7x only has 64 MiB of VMEM).
    return int(min(needed_bytes + VMEM_HEADROOM, 96 << 20))


# ---------------------------------------------------------------------------
# Kernels
# ---------------------------------------------------------------------------
def _bn_stats_kernel(x_ref, gamma_ref, beta_ref,
                     scale_ref, shift_ref, mean_ref, var_ref):
    """Per-feature batch stats -> folded BN scale/shift, one D tile per step."""
    x = x_ref[...].astype(jnp.float32)                     # (N, td)
    inv_n = 1.0 / x.shape[0]
    mean = jnp.sum(x, axis=0, keepdims=True) * inv_n        # (1, td)
    centered = x - mean
    # Two-pass (centered) variance: numerically robust vs E[x^2]-E[x]^2.
    var = jnp.sum(centered * centered, axis=0, keepdims=True) * inv_n
    scale = jax.lax.rsqrt(var + EPS) * gamma_ref[...]        # fold gamma
    shift = beta_ref[...] - mean * scale
    scale_ref[...] = scale
    shift_ref[...] = shift
    mean_ref[...] = mean
    var_ref[...] = var


def _bn_matmul_kernel(x_ref, scale_ref, shift_ref, w_ref, out_ref):
    """Fused BN-apply (f32) + bias-free Linear (bf16 MXU, f32 accumulation)."""
    feat = (x_ref[...].astype(jnp.float32) * scale_ref[...]
            + shift_ref[...]).astype(jnp.bfloat16)
    out_ref[...] = jnp.dot(
        feat, w_ref[...], preferred_element_type=jnp.float32
    ).astype(out_ref.dtype)


def _bn_apply_kernel(x_ref, scale_ref, shift_ref, out_ref):
    """Eval-mode BatchNorm1d: x * scale + shift with precomputed vectors."""
    x = x_ref[...].astype(jnp.float32)
    out_ref[...] = (x * scale_ref[...] + shift_ref[...]).astype(out_ref.dtype)


# ---------------------------------------------------------------------------
# Pallas wrappers
# ---------------------------------------------------------------------------
def _bn_batch_stats(x, gamma, beta):
    n, d = x.shape
    td = _pick_div_tile(
        d, (2048, 1024, 512, 256, 128),
        lambda t: 2 * n * t * 4 + 16 * t * 4 <= VMEM_TILE_BUDGET)
    needed = 2 * n * td * 4 + 16 * td * 4
    return pl.pallas_call(
        _bn_stats_kernel,
        out_shape=tuple(jax.ShapeDtypeStruct((1, d), jnp.float32)
                        for _ in range(4)),
        grid_spec=pltpu.PrefetchScalarGridSpec(
            num_scalar_prefetch=0,
            grid=(d // td,),
            in_specs=[
                pl.BlockSpec((n, td), lambda j: (0, j)),     # x columns streamed
                pl.BlockSpec((1, td), lambda j: (0, j)),     # gamma
                pl.BlockSpec((1, td), lambda j: (0, j)),     # beta
            ],
            out_specs=[pl.BlockSpec((1, td), lambda j: (0, j))] * 4,
        ),
        compiler_params=pltpu.CompilerParams(
            dimension_semantics=("parallel",),
            vmem_limit_bytes=_vmem_limit(needed),
        ),
    )(x, gamma, beta)


def _bn_fc_train(x, scale, shift, w_pad):
    n, d = x.shape
    c_pad = w_pad.shape[1]

    # C tile: keep W fully resident when small (one DMA, no C streaming);
    # otherwise stream 512- or 256-wide tiles (never 128: half-feeds the MXU).
    def w_fits(t):
        return 2 * d * t * 2 <= VMEM_TILE_BUDGET // 2
    if w_fits(c_pad):
        tc = c_pad
    elif c_pad % 512 == 0 and w_fits(512):
        tc = 512
    else:
        tc = 256

    # N tile: largest divisor of N that fits next to the W/out tiles + params.
    def n_fits(t):
        return (2 * t * d * 4          # x tile, double-buffered f32
                + 2 * d * tc * 2       # W tile, double-buffered bf16
                + 2 * t * tc * 4       # out tile, double-buffered f32
                + 4 * d * 4 * 2        # scale/shift
                ) <= VMEM_TILE_BUDGET
    tn = _pick_div_tile(n, (512, 256, 128, 64, 32, 16, 8), n_fits)
    needed = 2 * tn * d * 4 + 2 * d * tc * 2 + 2 * tn * tc * 4 + 4 * d * 4 * 2

    return pl.pallas_call(
        _bn_matmul_kernel,
        out_shape=jax.ShapeDtypeStruct((n, c_pad), jnp.float32),
        grid_spec=pltpu.PrefetchScalarGridSpec(
            num_scalar_prefetch=0,
            grid=(n // tn, c_pad // tc),                     # C innermost: x
            in_specs=[                                       # re-DMA'd per N only
                pl.BlockSpec((tn, d), lambda i, j: (i, 0)),  # x rows
                pl.BlockSpec((1, d), lambda i, j: (0, 0)),   # scale (resident)
                pl.BlockSpec((1, d), lambda i, j: (0, 0)),   # shift (resident)
                pl.BlockSpec((d, tc), lambda i, j: (0, j)),  # W streamed over C
            ],
            out_specs=pl.BlockSpec((tn, tc), lambda i, j: (i, j)),
        ),
        compiler_params=pltpu.CompilerParams(
            # Fully independent output tiles -> both axes parallel (2 TCs on v7x).
            dimension_semantics=("parallel", "parallel"),
            vmem_limit_bytes=_vmem_limit(needed),
        ),
    )(x, scale, shift, w_pad)


def _bn_eval(x, scale, shift):
    n, d = x.shape

    def fits(t):
        return 4 * t * d * 4 + 4 * d * 4 <= VMEM_TILE_BUDGET  # x + out, 2 bufs
    tn = _pick_div_tile(n, (1024, 512, 256, 128, 64, 32, 16, 8), fits)
    needed = 4 * tn * d * 4 + 4 * d * 4

    return pl.pallas_call(
        _bn_apply_kernel,
        out_shape=jax.ShapeDtypeStruct((n, d), x.dtype),
        grid_spec=pltpu.PrefetchScalarGridSpec(
            num_scalar_prefetch=0,
            grid=(n // tn,),
            in_specs=[
                pl.BlockSpec((tn, d), lambda i: (i, 0)),
                pl.BlockSpec((1, d), lambda i: (0, 0)),
                pl.BlockSpec((1, d), lambda i: (0, 0)),
            ],
            out_specs=pl.BlockSpec((tn, d), lambda i: (i, 0)),
        ),
        compiler_params=pltpu.CompilerParams(
            dimension_semantics=("parallel",),
            vmem_limit_bytes=_vmem_limit(needed),
        ),
    )(x, scale, shift)


# ---------------------------------------------------------------------------
# Public forward
# ---------------------------------------------------------------------------
@functools.partial(jax.jit, static_argnames=("training", "return_updated_stats"))
def bn_classifier_forward(x, params, *, training=True, return_updated_stats=False):
    """Forward pass of BNClassifier.

    Args:
      x: (N, D) float32 input features.
      params: dict with 'gamma', 'beta', 'running_mean', 'running_var' (1, D),
        'w_t' (D, C) f32 reference copy, 'w_pad_bf16' (D, round_up(C,256)) bf16.
      training: True -> class scores (N, C); False -> BN(eval) feature (N, D).
      return_updated_stats: in training, also return the PyTorch-style updated
        running_mean / running_var (momentum 0.1, unbiased variance).
    """
    n, d = x.shape
    gamma, beta = params["gamma"], params["beta"]

    # Tiny-shape fallback: below one (8, 128) vreg tile the kernels are pure
    # fixed overhead; plain XLA is faster and always correct.
    use_xla = (n < 8) or (d < LANE)

    if training:
        if use_xla:
            mean = jnp.mean(x, axis=0, keepdims=True)
            var = jnp.mean(jnp.square(x - mean), axis=0, keepdims=True)
            scale = gamma * jax.lax.rsqrt(var + EPS)
            shift = beta - mean * scale
            feat = (x * scale + shift).astype(jnp.bfloat16)
            cls = jnp.dot(feat, params["w_pad_bf16"],
                          preferred_element_type=jnp.float32)
        else:
            scale, shift, mean, var = _bn_batch_stats(x, gamma, beta)
            cls = _bn_fc_train(x, scale, shift, params["w_pad_bf16"])
        c = params["w_t"].shape[1]
        cls = cls[:, :c]                       # drop lane padding
        if not return_updated_stats:
            return cls
        unbiased = var * (n / max(n - 1, 1))   # PyTorch uses unbiased var here
        new_rm = (1.0 - MOMENTUM) * params["running_mean"] + MOMENTUM * mean
        new_rv = (1.0 - MOMENTUM) * params["running_var"] + MOMENTUM * unbiased
        return cls, new_rm, new_rv

    # Eval: running statistics; fold scale/shift in the wrapper so the kernel
    # only DMAs two (1, D) vectors instead of four.
    scale = gamma * jax.lax.rsqrt(params["running_var"] + EPS)
    shift = beta - params["running_mean"] * scale
    if use_xla:
        return x * scale + shift
    return _bn_eval(x, scale, shift)


def init_bn_classifier_params(key, in_dim, class_num):
    """Deterministic init matching the PyTorch module's __init__."""
    # weights_init_kaiming on BatchNorm: gamma=1, beta=0 (beta frozen anyway).
    gamma = jnp.ones((1, in_dim), jnp.float32)
    beta = jnp.zeros((1, in_dim), jnp.float32)
    running_mean = jnp.zeros((1, in_dim), jnp.float32)
    running_var = jnp.ones((1, in_dim), jnp.float32)
    # weights_init_classifier on Linear: normal(std=0.001), no bias.
    w = jax.random.normal(key, (class_num, in_dim), jnp.float32) * 0.001
    w_t = w.T                                              # (D, C)
    c_pad = _round_up(class_num, C_PAD_MULTIPLE)
    # Persistent lane-padded bf16 copy: no per-call pad+cast pass over W.
    w_pad_bf16 = jnp.zeros((in_dim, c_pad), jnp.bfloat16).at[:, :class_num].set(
        w_t.astype(jnp.bfloat16))
    return {
        "gamma": gamma,
        "beta": beta,
        "running_mean": running_mean,
        "running_var": running_var,
        "w_t": w_t,                # f32 copy (keeps class_num; reference math)
        "w_pad_bf16": w_pad_bf16,  # (D, round_up(C, 256)) kernel operand
    }


# ---------------------------------------------------------------------------
# Main
# ---------------------------------------------------------------------------
if __name__ == "__main__":
    key = jax.random.PRNGKey(0)
    k_x, k_w, k_g, k_b, k_rm, k_rv = jax.random.split(key, 6)

    batch, in_dim, class_num = 64, 256, 80
    x = jax.random.normal(k_x, (batch, in_dim), jnp.float32)
    params = init_bn_classifier_params(k_w, in_dim, class_num)
    # Randomize BN parameters / running stats so every term is exercised.
    params["gamma"] = jax.random.uniform(k_g, (1, in_dim), jnp.float32, 0.5, 1.5)
    params["beta"] = 0.1 * jax.random.normal(k_b, (1, in_dim), jnp.float32)
    params["running_mean"] = 0.1 * jax.random.normal(k_rm, (1, in_dim), jnp.float32)
    params["running_var"] = jax.random.uniform(k_rv, (1, in_dim), jnp.float32, 0.5, 1.5)

    # Training path: BN(batch stats) -> Linear (no bias) -> class scores,
    # plus the PyTorch running-stat updates.
    cls_score, new_rm, new_rv = jax.block_until_ready(
        bn_classifier_forward(x, params, training=True, return_updated_stats=True))

    # Eval path: batch-normalized feature with running stats.
    feature = jax.block_until_ready(
        bn_classifier_forward(x, params, training=False))

    # Pure-JAX references.
    mean = jnp.mean(x, axis=0, keepdims=True)
    var = jnp.mean(jnp.square(x - mean), axis=0, keepdims=True)
    feat_ref = (x - mean) / jnp.sqrt(var + EPS) * params["gamma"] + params["beta"]
    # The kernel feeds the MXU bf16 operands; mirror that in the reference.
    feat_bf = feat_ref.astype(jnp.bfloat16).astype(jnp.float32)
    w_bf = params["w_t"].astype(jnp.bfloat16).astype(jnp.float32)
    cls_ref = feat_bf @ w_bf
    rm_ref = (1 - MOMENTUM) * params["running_mean"] + MOMENTUM * mean
    rv_ref = (1 - MOMENTUM) * params["running_var"] + MOMENTUM * var * batch / (batch - 1)
    eval_scale = params["gamma"] / jnp.sqrt(params["running_var"] + EPS)
    feat_eval_ref = (x - params["running_mean"]) * eval_scale + params["beta"]

    assert cls_score.shape == (batch, class_num)
    assert feature.shape == (batch, in_dim)
    assert jnp.allclose(cls_score, cls_ref, atol=5e-4, rtol=5e-2), \
        float(jnp.max(jnp.abs(cls_score - cls_ref)))
    assert jnp.allclose(new_rm, rm_ref, atol=1e-5, rtol=1e-5)
    assert jnp.allclose(new_rv, rv_ref, atol=1e-5, rtol=1e-5)
    assert jnp.allclose(feature, feat_eval_ref, atol=1e-4, rtol=1e-4)

    print("KERNEL_OK")
</pallas_src>

<mosaic_0001>
module attributes {stable_mosaic.version = 11 : i64} {
  func.func @_bn_matmul_kernel(%arg0: i32, %arg1: i32, %arg2: memref<64x256xf32, #tpu.memory_space<vmem>>, %arg3: memref<1x256xf32, #tpu.memory_space<vmem>>, %arg4: memref<1x256xf32, #tpu.memory_space<vmem>>, %arg5: memref<256x256xbf16, #tpu.memory_space<vmem>>, %arg6: memref<64x256xf32, #tpu.memory_space<vmem>>) attributes {dimension_semantics = [#tpu.dimension_semantics<parallel>, #tpu.dimension_semantics<parallel>], iteration_bounds = array<i64: 1, 1>, scalar_prefetch = 0 : i64, scratch_operands = 0 : i64, tpu.core_type = #tpu.core_type<tc>, window_params = [{transform_indices = @transform_0, window_bounds = array<i64: 64, 256>}, {pipeline_mode = #tpu.pipeline_mode<synchronous>, transform_indices = @transform_1, window_bounds = array<i64: 1, 256>}, {pipeline_mode = #tpu.pipeline_mode<synchronous>, transform_indices = @transform_2, window_bounds = array<i64: 1, 256>}, {transform_indices = @transform_3, window_bounds = array<i64: 256, 256>}, {transform_indices = @transform_4, window_bounds = array<i64: 64, 256>}]} {
    %c0 = arith.constant 0 : index
    %c0_0 = arith.constant 0 : index
    %0 = vector.load %arg2[%c0, %c0_0] : memref<64x256xf32, #tpu.memory_space<vmem>>, vector<64x256xf32>
    %c0_1 = arith.constant 0 : index
    %c0_2 = arith.constant 0 : index
    %1 = vector.load %arg3[%c0_1, %c0_2] : memref<1x256xf32, #tpu.memory_space<vmem>>, vector<1x256xf32>
    %2 = vector.broadcast %1 : vector<1x256xf32> to vector<64x256xf32>
    %3 = arith.mulf %0, %2 : vector<64x256xf32>
    %c0_3 = arith.constant 0 : index
    %c0_4 = arith.constant 0 : index
    %4 = vector.load %arg4[%c0_3, %c0_4] : memref<1x256xf32, #tpu.memory_space<vmem>>, vector<1x256xf32>
    %5 = vector.broadcast %4 : vector<1x256xf32> to vector<64x256xf32>
    %6 = arith.addf %3, %5 : vector<64x256xf32>
    %7 = arith.truncf %6 : vector<64x256xf32> to vector<64x256xbf16>
    %c0_5 = arith.constant 0 : index
    %c0_6 = arith.constant 0 : index
    %8 = vector.load %arg5[%c0_5, %c0_6] : memref<256x256xbf16, #tpu.memory_space<vmem>>, vector<256x256xbf16>
    %cst = arith.constant dense<0.000000e+00> : vector<64x256xf32>
    %9 = tpu.matmul %7, %8, %cst {dimension_numbers = #tpu.dot_dimension_numbers<[1], [0], [0], [1], [0, 0, 1, 1], [], []>} : vector<64x256xbf16>, vector<256x256xbf16>, vector<64x256xf32> -> vector<64x256xf32>
    %c0_7 = arith.constant 0 : index
    %c0_8 = arith.constant 0 : index
    %10 = vector.load %arg6[%c0_7, %c0_8] : memref<64x256xf32, #tpu.memory_space<vmem>>, vector<64x256xf32>
    tpu.vector_store %arg6[%c0_7, %c0_8], %9 {strides = array<i32>} : memref<64x256xf32, #tpu.memory_space<vmem>>, vector<64x256xf32>,
    return
  }
  func.func @transform_0(%arg0: i32, %arg1: i32) -> (i32, i32) {
    %c0_i32 = arith.constant 0 : i32
    %c0_i32_0 = arith.constant 0 : i32
    return %arg0, %c0_i32 : i32, i32
  }
  func.func @transform_1(%arg0: i32, %arg1: i32) -> (i32, i32) {
    %c0_i32 = arith.constant 0 : i32
    %c0_i32_0 = arith.constant 0 : i32
    %c0_i32_1 = arith.constant 0 : i32
    return %c0_i32, %c0_i32_0 : i32, i32
  }
  func.func @transform_2(%arg0: i32, %arg1: i32) -> (i32, i32) {
    %c0_i32 = arith.constant 0 : i32
    %c0_i32_0 = arith.constant 0 : i32
    %c0_i32_1 = arith.constant 0 : i32
    return %c0_i32, %c0_i32_0 : i32, i32
  }
  func.func @transform_3(%arg0: i32, %arg1: i32) -> (i32, i32) {
    %c0_i32 = arith.constant 0 : i32
    %c0_i32_0 = arith.constant 0 : i32
    return %c0_i32, %arg1 : i32, i32
  }
  func.func @transform_4(%arg0: i32, %arg1: i32) -> (i32, i32) {
    %c0_i32 = arith.constant 0 : i32
    return %arg0, %arg1 : i32, i32
  }
}

module attributes {stable_mosaic.version = 11 : i64} {
  func.func @_bn_stats_kernel(%arg0: i32, %arg1: memref<64x256xf32, #tpu.memory_space<vmem>>, %arg2: memref<1x256xf32, #tpu.memory_space<vmem>>, %arg3: memref<1x256xf32, #tpu.memory_space<vmem>>, %arg4: memref<1x256xf32, #tpu.memory_space<vmem>>, %arg5: memref<1x256xf32, #tpu.memory_space<vmem>>, %arg6: memref<1x256xf32, #tpu.memory_space<vmem>>, %arg7: memref<1x256xf32, #tpu.memory_space<vmem>>) attributes {dimension_semantics = [#tpu.dimension_semantics<parallel>], iteration_bounds = array<i64: 1>, scalar_prefetch = 0 : i64, scratch_operands = 0 : i64, tpu.core_type = #tpu.core_type<tc>, window_params = [{transform_indices = @transform_0, window_bounds = array<i64: 64, 256>}, {transform_indices = @transform_1, window_bounds = array<i64: 1, 256>}, {transform_indices = @transform_2, window_bounds = array<i64: 1, 256>}, {transform_indices = @transform_3, window_bounds = array<i64: 1, 256>}, {transform_indices = @transform_4, window_bounds = array<i64: 1, 256>}, {transform_indices = @transform_5, window_bounds = array<i64: 1, 256>}, {transform_indices = @transform_6, window_bounds = array<i64: 1, 256>}]} {
    %c0 = arith.constant 0 : index
    %c0_0 = arith.constant 0 : index
    %0 = vector.load %arg1[%c0, %c0_0] : memref<64x256xf32, #tpu.memory_space<vmem>>, vector<64x256xf32>
    %cst = arith.constant dense<0.000000e+00> : vector<256xf32>
    %1 = vector.multi_reduction <add>, %0, %cst [0] : vector<64x256xf32> to vector<256xf32>
    %2 = vector.shape_cast %1 : vector<256xf32> to vector<1x256xf32>
    %cst_1 = arith.constant 1.562500e-02 : f32
    %3 = vector.broadcast %cst_1 : f32 to vector<1x256xf32>
    %4 = arith.mulf %2, %3 : vector<1x256xf32>
    %5 = vector.broadcast %4 : vector<1x256xf32> to vector<64x256xf32>
    %6 = arith.subf %0, %5 : vector<64x256xf32>
    %7 = arith.mulf %6, %6 : vector<64x256xf32>
    %cst_2 = arith.constant dense<0.000000e+00> : vector<256xf32>
    %8 = vector.multi_reduction <add>, %7, %cst_2 [0] : vector<64x256xf32> to vector<256xf32>
    %9 = vector.shape_cast %8 : vector<256xf32> to vector<1x256xf32>
    %cst_3 = arith.constant 1.562500e-02 : f32
    %10 = vector.broadcast %cst_3 : f32 to vector<1x256xf32>
    %11 = arith.mulf %9, %10 : vector<1x256xf32>
    %cst_4 = arith.constant 9.99999974E-6 : f32
    %12 = vector.broadcast %cst_4 : f32 to vector<1x256xf32>
    %13 = arith.addf %11, %12 : vector<1x256xf32>
    %14 = math.rsqrt %13 : vector<1x256xf32>
    %c0_5 = arith.constant 0 : index
    %c0_6 = arith.constant 0 : index
    %15 = vector.load %arg2[%c0_5, %c0_6] : memref<1x256xf32, #tpu.memory_space<vmem>>, vector<1x256xf32>
    %16 = arith.mulf %14, %15 : vector<1x256xf32>
    %c0_7 = arith.constant 0 : index
    %c0_8 = arith.constant 0 : index
    %17 = vector.load %arg3[%c0_7, %c0_8] : memref<1x256xf32, #tpu.memory_space<vmem>>, vector<1x256xf32>
    %18 = arith.mulf %4, %16 : vector<1x256xf32>
    %19 = arith.subf %17, %18 : vector<1x256xf32>
    %c0_9 = arith.constant 0 : index
    %c0_10 = arith.constant 0 : index
    %20 = vector.load %arg4[%c0_9, %c0_10] : memref<1x256xf32, #tpu.memory_space<vmem>>, vector<1x256xf32>
    tpu.vector_store %arg4[%c0_9, %c0_10], %16 {strides = array<i32>} : memref<1x256xf32, #tpu.memory_space<vmem>>, vector<1x256xf32>,
    %c0_11 = arith.constant 0 : index
    %c0_12 = arith.constant 0 : index
    %21 = vector.load %arg5[%c0_11, %c0_12] : memref<1x256xf32, #tpu.memory_space<vmem>>, vector<1x256xf32>
    tpu.vector_store %arg5[%c0_11, %c0_12], %19 {strides = array<i32>} : memref<1x256xf32, #tpu.memory_space<vmem>>, vector<1x256xf32>,
    %c0_13 = arith.constant 0 : index
    %c0_14 = arith.constant 0 : index
    %22 = vector.load %arg6[%c0_13, %c0_14] : memref<1x256xf32, #tpu.memory_space<vmem>>, vector<1x256xf32>
    tpu.vector_store %arg6[%c0_13, %c0_14], %4 {strides = array<i32>} : memref<1x256xf32, #tpu.memory_space<vmem>>, vector<1x256xf32>,
    %c0_15 = arith.constant 0 : index
    %c0_16 = arith.constant 0 : index
    %23 = vector.load %arg7[%c0_15, %c0_16] : memref<1x256xf32, #tpu.memory_space<vmem>>, vector<1x256xf32>
    tpu.vector_store %arg7[%c0_15, %c0_16], %11 {strides = array<i32>} : memref<1x256xf32, #tpu.memory_space<vmem>>, vector<1x256xf32>,
    return
  }
  func.func @transform_0(%arg0: i32) -> (i32, i32) {
    %c0_i32 = arith.constant 0 : i32
    %c0_i32_0 = arith.constant 0 : i32
    return %c0_i32, %arg0 : i32, i32
  }
  func.func @transform_1(%arg0: i32) -> (i32, i32) {
    %c0_i32 = arith.constant 0 : i32
    %c0_i32_0 = arith.constant 0 : i32
    return %c0_i32, %arg0 : i32, i32
  }
  func.func @transform_2(%arg0: i32) -> (i32, i32) {
    %c0_i32 = arith.constant 0 : i32
    %c0_i32_0 = arith.constant 0 : i32
    return %c0_i32, %arg0 : i32, i32
  }
  func.func @transform_3(%arg0: i32) -> (i32, i32) {
    %c0_i32 = arith.constant 0 : i32
    %c0_i32_0 = arith.constant 0 : i32
    return %c0_i32, %arg0 : i32, i32
  }
  func.func @transform_4(%arg0: i32) -> (i32, i32) {
    %c0_i32 = arith.constant 0 : i32
    %c0_i32_0 = arith.constant 0 : i32
    return %c0_i32, %arg0 : i32, i32
  }
  func.func @transform_5(%arg0: i32) -> (i32, i32) {
    %c0_i32 = arith.constant 0 : i32
    %c0_i32_0 = arith.constant 0 : i32
    return %c0_i32, %arg0 : i32, i32
  }
  func.func @transform_6(%arg0: i32) -> (i32, i32) {
    %c0_i32 = arith.constant 0 : i32
    %c0_i32_0 = arith.constant 0 : i32
    return %c0_i32, %arg0 : i32, i32
  }
}

</mosaic_0001>

<llo_original>
// kernel: bn_classifier_forward.2
$region0: #{bn_classifier_forward.2}
  #allocation0 [shape = 'u32[]', space=smem, size = 0x4, offset = 0x4, fixed_abs, tag = 'smem constant byte address 0x4 - core index']
  #allocation1 [shape = 'u32[144,128]{1,0:T(1,128)}', space=vmem, size = 0x12000, scoped, tag = 'internal scratch']
  %s0 = inlined_call_operand.hbm [shape: f32[64,256], index: 0, kind: input, shape index: {}]
  %s1 = inlined_call_operand.hbm [shape: f32[1,256], index: 1, kind: input, shape index: {}]
  %s2 = inlined_call_operand.hbm [shape: f32[1,256], index: 2, kind: input, shape index: {}]
  %s3 = inlined_call_operand.vmem [shape: f32[1,256], index: 3, kind: output, shape index: {0}]
  %s4 = inlined_call_operand.vmem [shape: f32[1,256], index: 4, kind: output, shape index: {1}]
  %s5 = inlined_call_operand.vmem [shape: f32[1,256], index: 5, kind: output, shape index: {2}]
  %s6 = inlined_call_operand.vmem [shape: f32[1,256], index: 6, kind: output, shape index: {3}]
  %7 = xla_tuple %s3, %s4, %s5, %s6
  %s8 = sld [smem:[#allocation0]]
  $region58: #{bn_classifier_forward.2} parent=0
    _
  %s10 = ssub.s32 1, %s8
  %s11 = scalar_select 0, %s10, %s8
  $region1: #{bn_classifier_forward.2} parent=0
    #allocation2 [shape = 'u8[65536]{0}', space=vmem, size = 0x10000, scoped, tag = 'input window, operand 0, single buffered']
    #allocation3 [shape = 's32[1]{0}', space=sflag, size = 0x4, scoped, tag = 'scoped memory for bn_classifier_forward.2']
    #allocation4 [shape = 'u8[1024]{0}', space=vmem, size = 0x400, scoped, tag = 'input window, operand 1, single buffered']
    #allocation5 [shape = 's32[1]{0}', space=sflag, size = 0x4, scoped, tag = 'scoped memory for bn_classifier_forward.2']
    #allocation6 [shape = 'u8[1024]{0}', space=vmem, size = 0x400, scoped, tag = 'input window, operand 2, single buffered']
    %12 = vsyncpa [#allocation3], 0
    %13 = vsyncpa [#allocation5], 0
    // Predicated region
    $region2: #{bn_classifier_forward.2} parent=1 // pred_check
      _
    $region3: #{bn_classifier_forward.2} parent=1 // pred_check_branch
      %15 = sbr.rel (0) target = $region5
    $region4: #{bn_classifier_forward.2} parent=1 // pred_region
      %s17 = ssub.s32 2048, 2048
      %18 = vsyncadd [#allocation3], %s17
      %s19 = sshll.u32 [#allocation2], 4
      %s20 = int_to_ptr.vmem [resolvable:$true] %s19
      %25 = dma.hbm_to_vmem [thread:$0]  %s0, 2048, %s20, [#allocation3], 256, 256, 16
    $region5: #{bn_classifier_forward.2} parent=1 // pred_fallthru
      _
    // Predicated region
    $region6: #{bn_classifier_forward.2} parent=1 // pred_check
      _
    $region7: #{bn_classifier_forward.2} parent=1 // pred_check_branch
      %27 = sbr.rel (0) target = $region9
    $region8: #{bn_classifier_forward.2} parent=1 // pred_region
      %s29 = ssub.s32 32, 32
      %30 = vsyncadd [#allocation5], %s29
      %s32 = sshll.u32 [#allocation4], 4
      %s33 = int_to_ptr.vmem [resolvable:$true] %s32
      %35 = dma.hbm_to_vmem [thread:$0]  %s1, 32, %s33, [#allocation5]
    $region9: #{bn_classifier_forward.2} parent=1 // pred_fallthru
      _
    // Predicated region
    $region10: #{bn_classifier_forward.2} parent=1 // pred_check
      _
    $region11: #{bn_classifier_forward.2} parent=1 // pred_check_branch
      %37 = sbr.rel (0) target = $region13
    $region12: #{bn_classifier_forward.2} parent=1 // pred_region
      %s39 = ssub.s32 32, 32
      %40 = vsyncadd [#allocation5], %s39
      %s42 = sshll.u32 [#allocation6], 4
      %s43 = int_to_ptr.vmem [resolvable:$true] %s42
      %45 = dma.hbm_to_vmem [thread:$0]  %s2, 32, %s43, [#allocation5]
    $region13: #{bn_classifier_forward.2} parent=1 // pred_fallthru
      _
    // Predicated region
    $region14: #{bn_classifier_forward.2} parent=1 // pred_check
      _
    $region15: #{bn_classifier_forward.2} parent=1 // pred_check_branch
      %47 = sbr.rel (0) target = $region17
    $region16: #{bn_classifier_forward.2} parent=1 // pred_region
      %48 = dma.done [#allocation3], 2048
    $region17: #{bn_classifier_forward.2} parent=1 // pred_fallthru
      _
    // Predicated region
    $region18: #{bn_classifier_forward.2} parent=1 // pred_check
      _
    $region19: #{bn_classifier_forward.2} parent=1 // pred_check_branch
      %50 = sbr.rel (0) target = $region21
    $region20: #{bn_classifier_forward.2} parent=1 // pred_region
      %51 = dma.done [#allocation5], 32
    $region21: #{bn_classifier_forward.2} parent=1 // pred_fallthru
      _
    // Predicated region
    $region22: #{bn_classifier_forward.2} parent=1 // pred_check
      _
    $region23: #{bn_classifier_forward.2} parent=1 // pred_check_branch
      %53 = sbr.rel (0) target = $region25
    $region24: #{bn_classifier_forward.2} parent=1 // pred_region
      %54 = dma.done [#allocation5], 32
    $region25: #{bn_classifier_forward.2} parent=1 // pred_fallthru
      _
    %v55 = vld [vmem:[#allocation2] sm:$0xff]
    %v56 = vld [vmem:[#allocation2 + $0x8] sm:$0xff]
    %v57 = vld [vmem:[#allocation2 + $0x10] sm:$0xff]
    %v58 = vld [vmem:[#allocation2 + $0x18] sm:$0xff]
    %v59 = vld [vmem:[#allocation2 + $0x20] sm:$0xff]
    %v60 = vld [vmem:[#allocation2 + $0x28] sm:$0xff]
    %v61 = vld [vmem:[#allocation2 + $0x30] sm:$0xff]
    %v62 = vld [vmem:[#allocation2 + $0x38] sm:$0xff]
    %v63 = vld [vmem:[#allocation2 + $0x40] sm:$0xff]
    %v64 = vld [vmem:[#allocation2 + $0x48] sm:$0xff]
    %v65 = vld [vmem:[#allocation2 + $0x50] sm:$0xff]
    %v66 = vld [vmem:[#allocation2 + $0x58] sm:$0xff]
    %v67 = vld [vmem:[#allocation2 + $0x60] sm:$0xff]
    %v68 = vld [vmem:[#allocation2 + $0x68] sm:$0xff]
    %v69 = vld [vmem:[#allocation2 + $0x70] sm:$0xff]
    %v70 = vld [vmem:[#allocation2 + $0x78] sm:$0xff]
    %v71 = vadd.f32 %v55, %v57
    %v72 = vadd.f32 %v71, %v59
    %v73 = vadd.f32 %v72, %v61
    %v74 = vadd.f32 %v73, %v63
    %v75 = vadd.f32 %v74, %v65
    %v76 = vadd.f32 %v75, %v67
    %v77 = vadd.f32 %v76, %v69
    %v78 = vrot.slane %v77, 4
    %v79 = vadd.f32 %v77, %v78
    %v80 = vrot.slane %v79, 2
    %v81 = vadd.f32 %v79, %v80
    %v82 = vrot.slane %v81, 1
    %v83 = vadd.f32 %v81, %v82
    %v84 = vadd.f32 %v56, %v58
    %v85 = vadd.f32 %v84, %v60
    %v86 = vadd.f32 %v85, %v62
    %v87 = vadd.f32 %v86, %v64
    %v88 = vadd.f32 %v87, %v66
    %v89 = vadd.f32 %v88, %v68
    %v90 = vadd.f32 %v89, %v70
    %v91 = vrot.slane %v90, 4
    %v92 = vadd.f32 %v90, %v91
    %v93 = vrot.slane %v92, 2
    %v94 = vadd.f32 %v92, %v93
    %v95 = vrot.slane %v94, 1
    %v96 = vadd.f32 %v94, %v95
    %v97 = vmul.f32 %v83, 0.015625
    %v98 = vmul.f32 %v96, 0.015625
    %v99 = vsub.f32 %v55, %v97
    %v100 = vsub.f32 %v56, %v98
    %v101 = vsub.f32 %v57, %v97
    %v102 = vsub.f32 %v58, %v98
    %v103 = vsub.f32 %v59, %v97
    %v104 = vsub.f32 %v60, %v98
    %v105 = vsub.f32 %v61, %v97
    %v106 = vsub.f32 %v62, %v98
    %v107 = vsub.f32 %v63, %v97
    %v108 = vsub.f32 %v64, %v98
    %v109 = vsub.f32 %v65, %v97
    %v110 = vsub.f32 %v66, %v98
    %v111 = vsub.f32 %v67, %v97
    %v112 = vsub.f32 %v68, %v98
    %v113 = vsub.f32 %v69, %v97
    %v114 = vsub.f32 %v70, %v98
    %v115 = vmul.f32 %v99, %v99
    %v116 = vmul.f32 %v100, %v100
    %v117 = vmul.f32 %v101, %v101
    %v118 = vmul.f32 %v102, %v102
    %v119 = vmul.f32 %v103, %v103
    %v120 = vmul.f32 %v104, %v104
    %v121 = vmul.f32 %v105, %v105
    %v122 = vmul.f32 %v106, %v106
    %v123 = vmul.f32 %v107, %v107
    %v124 = vmul.f32 %v108, %v108
    %v125 = vmul.f32 %v109, %v109
    %v126 = vmul.f32 %v110, %v110
    %v127 = vmul.f32 %v111, %v111
    %v128 = vmul.f32 %v112, %v112
    %v129 = vmul.f32 %v113, %v113
    %v130 = vmul.f32 %v114, %v114
    %v131 = vadd.f32 %v115, %v117
    %v132 = vadd.f32 %v131, %v119
    %v133 = vadd.f32 %v132, %v121
    %v134 = vadd.f32 %v133, %v123
    %v135 = vadd.f32 %v134, %v125
    %v136 = vadd.f32 %v135, %v127
    %v137 = vadd.f32 %v136, %v129
    %v138 = vrot.slane %v137, 4
    %v139 = vadd.f32 %v137, %v138
    %v140 = vrot.slane %v139, 2
    %v141 = vadd.f32 %v139, %v140
    %v142 = vrot.slane %v141, 1
    %v143 = vadd.f32 %v141, %v142
    %v144 = vadd.f32 %v116, %v118
    %v145 = vadd.f32 %v144, %v120
    %v146 = vadd.f32 %v145, %v122
    %v147 = vadd.f32 %v146, %v124
    %v148 = vadd.f32 %v147, %v126
    %v149 = vadd.f32 %v148, %v128
    %v150 = vadd.f32 %v149, %v130
    %v151 = vrot.slane %v150, 4
    %v152 = vadd.f32 %v150, %v151
    %v153 = vrot.slane %v152, 2
    %v154 = vadd.f32 %v152, %v153
    %v155 = vrot.slane %v154, 1
    %v156 = vadd.f32 %v154, %v155
    %v157 = vmul.f32 %v143, 0.015625
    %v158 = vmul.f32 %v156, 0.015625
    %v159 = vadd.f32 %v157, 1e-05
    %v160 = vadd.f32 %v158, 1e-05
    %v161 = vrsqrt.pop %v159
    %v162 = vrsqrt.pop %v160
    %v163 = vld [vmem:[#allocation4] sm:$0x3]
    %v165 = vlaneseq
    %v166 = vshrl.u32 %v165, 7
    %v167 = vsub.s32 0, %v166
    %v168 = vrot.slane %v163, %v167
    %v169 = vlaneseq
    %v170 = vshrl.u32 %v169, 7
    %v171 = vsub.s32 1, %v170
    %v172 = vrot.slane %v163, %v171
    %v175 = vmul.f32 %v161, %v168
    %v176 = vmul.f32 %v162, %v172
    %v177 = vld [vmem:[#allocation6] sm:$0x3]
    %v178 = vmul.f32 %v97, %v175
    %v179 = vmul.f32 %v98, %v176
    %v182 = vcombine.low %v178, %v179
    %v184 = vunpack.c.l.s4 1966171168
    %v185 = vunpack.c.0.s8 %v184
    %v186 = vlaneseq
    %v187 = vshrl.u32 %v186, 7
    %v188 = vsub.s32 %v185, %v187
    %v189 = vrot.slane %v182, %v188
    %v191 = vunpack.c.l.s4 1966171168
    %v192 = vunpack.c.0.s8 %v191
    %v193 = vlaneseq
    %v194 = vshrl.u32 %v193, 7
    %v195 = vsub.s32 %v192, %v194
    %v196 = vrot.slane %v189, %v195
    %v198 = vsub.f32 %v177, %v196
    %v201 = vcombine.low %v175, %v176
    %v203 = vunpack.c.l.s4 1966171168
    %v204 = vunpack.c.0.s8 %v203
    %v205 = vlaneseq
    %v206 = vshrl.u32 %v205, 7
    %v207 = vsub.s32 %v204, %v206
    %v208 = vrot.slane %v201, %v207
    %v210 = vunpack.c.l.s4 1966171168
    %v211 = vunpack.c.0.s8 %v210
    %v212 = vlaneseq
    %v213 = vshrl.u32 %v212, 7
    %v214 = vsub.s32 %v211, %v213
    %v215 = vrot.slane %v208, %v214
    %v217 = vlaneseq
    %vm218 = vcmp.ge.s32.totalorder %v217, 0
    %vm219 = vcmp.lt.s32.totalorder %v217, 256
    %vm220 = vmand %vm218, %vm219
    %221 = vst.msk [vmem:[%s3] sm:$0x3] %vm220, %v215
    %222 = vst.msk [vmem:[%s4] sm:$0x3] %vm220, %v198
    %v225 = vcombine.low %v97, %v98
    %v227 = vunpack.c.l.s4 1966171168
    %v228 = vunpack.c.0.s8 %v227
    %v229 = vlaneseq
    %v230 = vshrl.u32 %v229, 7
    %v231 = vsub.s32 %v228, %v230
    %v232 = vrot.slane %v225, %v231
    %v234 = vunpack.c.l.s4 1966171168
    %v235 = vunpack.c.0.s8 %v234
    %v236 = vlaneseq
    %v237 = vshrl.u32 %v236, 7
    %v238 = vsub.s32 %v235, %v237
    %v239 = vrot.slane %v232, %v238
    %241 = vst.msk [vmem:[%s5] sm:$0x3] %vm220, %v239
    %v244 = vcombine.low %v157, %v158
    %v246 = vunpack.c.l.s4 1966171168
    %v247 = vunpack.c.0.s8 %v246
    %v248 = vlaneseq
    %v249 = vshrl.u32 %v248, 7
    %v250 = vsub.s32 %v247, %v249
    %v251 = vrot.slane %v244, %v250
    %v253 = vunpack.c.l.s4 1966171168
    %v254 = vunpack.c.0.s8 %v253
    %v255 = vlaneseq
    %v256 = vshrl.u32 %v255, 7
    %v257 = vsub.s32 %v254, %v256
    %v258 = vrot.slane %v251, %v257
    %260 = vst.msk [vmem:[%s6] sm:$0x3] %vm220, %v258
    // Predicated region
    $region26: #{bn_classifier_forward.2} parent=1 // pred_check
      _
    $region27: #{bn_classifier_forward.2} parent=1 // pred_check_branch
      %262 = sbr.rel (0) target = $region29
    $region28: #{bn_classifier_forward.2} parent=1 // pred_region
      _
    $region29: #{bn_classifier_forward.2} parent=1 // pred_fallthru
      _
    // Predicated region
    $region30: #{bn_classifier_forward.2} parent=1 // pred_check
      _
    $region31: #{bn_classifier_forward.2} parent=1 // pred_check_branch
      %264 = sbr.rel (0) target = $region33
    $region32: #{bn_classifier_forward.2} parent=1 // pred_region
      _
    $region33: #{bn_classifier_forward.2} parent=1 // pred_fallthru
      _
    // Predicated region
    $region34: #{bn_classifier_forward.2} parent=1 // pred_check
      _
    $region35: #{bn_classifier_forward.2} parent=1 // pred_check_branch
      %266 = sbr.rel (0) target = $region37
    $region36: #{bn_classifier_forward.2} parent=1 // pred_region
      _
    $region37: #{bn_classifier_forward.2} parent=1 // pred_fallthru
      _
    // Predicated region
    $region38: #{bn_classifier_forward.2} parent=1 // pred_check
      _
    $region39: #{bn_classifier_forward.2} parent=1 // pred_check_branch
      %268 = sbr.rel (0) target = $region41
    $region40: #{bn_classifier_forward.2} parent=1 // pred_region
      _
    $region41: #{bn_classifier_forward.2} parent=1 // pred_fallthru
      _
    // Predicated region
    $region42: #{bn_classifier_forward.2} parent=1 // pred_check
      _
    $region43: #{bn_classifier_forward.2} parent=1 // pred_check_branch
      %270 = sbr.rel (0) target = $region45
    $region44: #{bn_classifier_forward.2} parent=1 // pred_region
      _
    $region45: #{bn_classifier_forward.2} parent=1 // pred_fallthru
      _
    // Predicated region
    $region46: #{bn_classifier_forward.2} parent=1 // pred_check
      _
    $region47: #{bn_classifier_forward.2} parent=1 // pred_check_branch
      %272 = sbr.rel (0) target = $region49
    $region48: #{bn_classifier_forward.2} parent=1 // pred_region
      _
    $region49: #{bn_classifier_forward.2} parent=1 // pred_fallthru
      _
    // Predicated region
    $region50: #{bn_classifier_forward.2} parent=1 // pred_check
      _
    $region51: #{bn_classifier_forward.2} parent=1 // pred_check_branch
      %274 = sbr.rel (0) target = $region53
    $region52: #{bn_classifier_forward.2} parent=1 // pred_region
      _
    $region53: #{bn_classifier_forward.2} parent=1 // pred_fallthru
      _
    // Predicated region
    $region54: #{bn_classifier_forward.2} parent=1 // pred_check
      _
    $region55: #{bn_classifier_forward.2} parent=1 // pred_check_branch
      %276 = sbr.rel (0) target = $region57
    $region56: #{bn_classifier_forward.2} parent=1 // pred_region
      _
    $region57: #{bn_classifier_forward.2} parent=1 // pred_fallthru
      _
    %277 = vsyncpa [#allocation3], 1
    %278 = vsyncpa [#allocation5], 1

// kernel: bn_classifier_forward.3
$region0: #{bn_classifier_forward.3}
  #allocation0 [shape = 'u32[]', space=smem, size = 0x4, offset = 0x4, fixed_abs, tag = 'smem constant byte address 0x4 - core index']
  #allocation1 [shape = 'u32[144,128]{1,0:T(1,128)}', space=vmem, size = 0x12000, scoped, tag = 'internal scratch']
  %s0 = inlined_call_operand.vmem [shape: f32[64,256], index: 0, kind: input, shape index: {}]
  %s1 = inlined_call_operand.vmem [shape: f32[1,256], index: 1, kind: input, shape index: {}]
  %s2 = inlined_call_operand.vmem [shape: f32[1,256], index: 2, kind: input, shape index: {}]
  %s3 = inlined_call_operand.hbm [shape: bf16[256,256], index: 3, kind: input, shape index: {}]
  %s4 = inlined_call_operand.vmem [shape: f32[64,256], index: 4, kind: output, shape index: {}]
  %s5 = sld [smem:[#allocation0]]
  $region30: #{bn_classifier_forward.3} parent=0
    _
  %s7 = ssub.s32 1, %s5
  %s8 = scalar_select 0, %s7, %s5
  $region1: #{bn_classifier_forward.3} parent=0
    #allocation2 [shape = 'u8[131072]{0}', space=vmem, size = 0x20000, scoped, tag = 'input window, operand 3, single buffered']
    #allocation3 [shape = 's32[1]{0}', space=sflag, size = 0x4, scoped, tag = 'scoped memory for bn_classifier_forward.3']
    %9 = vsyncpa [#allocation3], 0
    // Predicated region
    $region2: #{bn_classifier_forward.3} parent=1 // pred_check
      _
    $region3: #{bn_classifier_forward.3} parent=1 // pred_check_branch
      %11 = sbr.rel (0) target = $region5
    $region4: #{bn_classifier_forward.3} parent=1 // pred_region
      _
    $region5: #{bn_classifier_forward.3} parent=1 // pred_fallthru
      _
    // Predicated region
    $region6: #{bn_classifier_forward.3} parent=1 // pred_check
      _
    $region7: #{bn_classifier_forward.3} parent=1 // pred_check_branch
      %13 = sbr.rel (0) target = $region9
    $region8: #{bn_classifier_forward.3} parent=1 // pred_region
      _
    $region9: #{bn_classifier_forward.3} parent=1 // pred_fallthru
      _
    // Predicated region
    $region10: #{bn_classifier_forward.3} parent=1 // pred_check
      _
    $region11: #{bn_classifier_forward.3} parent=1 // pred_check_branch
      %15 = sbr.rel (0) target = $region13
    $region12: #{bn_classifier_forward.3} parent=1 // pred_region
      _
    $region13: #{bn_classifier_forward.3} parent=1 // pred_fallthru
      _
    // Predicated region
    $region14: #{bn_classifier_forward.3} parent=1 // pred_check
      _
    $region15: #{bn_classifier_forward.3} parent=1 // pred_check_branch
      %17 = sbr.rel (0) target = $region17
    $region16: #{bn_classifier_forward.3} parent=1 // pred_region
      %s19 = ssub.s32 4096, 4096
      %20 = vsyncadd [#allocation3], %s19
      %s21 = sshll.u32 [#allocation2], 4
      %s22 = int_to_ptr.vmem [resolvable:$true] %s21
      %27 = dma.hbm_to_vmem [thread:$0]  %s3, 4096, %s22, [#allocation3], 128, 128, 8
    $region17: #{bn_classifier_forward.3} parent=1 // pred_fallthru
      _
    // Predicated region
    $region18: #{bn_classifier_forward.3} parent=1 // pred_check
      _
    $region19: #{bn_classifier_forward.3} parent=1 // pred_check_branch
      %29 = sbr.rel (0) target = $region21
    $region20: #{bn_classifier_forward.3} parent=1 // pred_region
      %30 = dma.done [#allocation3], 4096
    $region21: #{bn_classifier_forward.3} parent=1 // pred_fallthru
      _
    %v31 = vld [vmem:[%s0] sm:$0xff]
    %v32 = vld [vmem:[%s0 + $0x8] sm:$0xff]
    %v33 = vld [vmem:[%s0 + $0x10] sm:$0xff]
    %v34 = vld [vmem:[%s0 + $0x18] sm:$0xff]
    %v35 = vld [vmem:[%s0 + $0x20] sm:$0xff]
    %v36 = vld [vmem:[%s0 + $0x28] sm:$0xff]
    %v37 = vld [vmem:[%s0 + $0x30] sm:$0xff]
    %v38 = vld [vmem:[%s0 + $0x38] sm:$0xff]
    %v39 = vld [vmem:[%s0 + $0x40] sm:$0xff]
    %v40 = vld [vmem:[%s0 + $0x48] sm:$0xff]
    %v41 = vld [vmem:[%s0 + $0x50] sm:$0xff]
    %v42 = vld [vmem:[%s0 + $0x58] sm:$0xff]
    %v43 = vld [vmem:[%s0 + $0x60] sm:$0xff]
    %v44 = vld [vmem:[%s0 + $0x68] sm:$0xff]
    %v45 = vld [vmem:[%s0 + $0x70] sm:$0xff]
    %v46 = vld [vmem:[%s0 + $0x78] sm:$0xff]
    %v47 = vld [vmem:[%s1] sm:$0x3]
    %v49 = vlaneseq
    %v50 = vshrl.u32 %v49, 7
    %v51 = vsub.s32 0, %v50
    %v52 = vrot.slane %v47, %v51
    %v53 = vlaneseq
    %v54 = vshrl.u32 %v53, 7
    %v55 = vsub.s32 1, %v54
    %v56 = vrot.slane %v47, %v55
    %v59 = vmul.f32 %v31, %v52
    %v60 = vmul.f32 %v32, %v56
    %v61 = vmul.f32 %v33, %v52
    %v62 = vmul.f32 %v34, %v56
    %v63 = vmul.f32 %v35, %v52
    %v64 = vmul.f32 %v36, %v56
    %v65 = vmul.f32 %v37, %v52
    %v66 = vmul.f32 %v38, %v56
    %v67 = vmul.f32 %v39, %v52
    %v68 = vmul.f32 %v40, %v56
    %v69 = vmul.f32 %v41, %v52
    %v70 = vmul.f32 %v42, %v56
    %v71 = vmul.f32 %v43, %v52
    %v72 = vmul.f32 %v44, %v56
    %v73 = vmul.f32 %v45, %v52
    %v74 = vmul.f32 %v46, %v56
    %v75 = vld [vmem:[%s2] sm:$0x3]
    %v77 = vlaneseq
    %v78 = vshrl.u32 %v77, 7
    %v79 = vsub.s32 0, %v78
    %v80 = vrot.slane %v75, %v79
    %v81 = vlaneseq
    %v82 = vshrl.u32 %v81, 7
    %v83 = vsub.s32 1, %v82
    %v84 = vrot.slane %v75, %v83
    %v87 = vadd.f32 %v59, %v80
    %v88 = vadd.f32 %v60, %v84
    %v89 = vadd.f32 %v61, %v80
    %v90 = vadd.f32 %v62, %v84
    %v91 = vadd.f32 %v63, %v80
    %v92 = vadd.f32 %v64, %v84
    %v93 = vadd.f32 %v65, %v80
    %v94 = vadd.f32 %v66, %v84
    %v95 = vadd.f32 %v67, %v80
    %v96 = vadd.f32 %v68, %v84
    %v97 = vadd.f32 %v69, %v80
    %v98 = vadd.f32 %v70, %v84
    %v99 = vadd.f32 %v71, %v80
    %v100 = vadd.f32 %v72, %v84
    %v101 = vadd.f32 %v73, %v80
    %v102 = vadd.f32 %v74, %v84
    %v103 = vpack.c.bf16 %v89, %v87
    %v104 = vpack.c.bf16 %v90, %v88
    %v105 = vpack.c.bf16 %v93, %v91
    %v106 = vpack.c.bf16 %v94, %v92
    %v107 = vpack.c.bf16 %v97, %v95
    %v108 = vpack.c.bf16 %v98, %v96
    %v109 = vpack.c.bf16 %v101, %v99
    %v110 = vpack.c.bf16 %v102, %v100
    %v111 = vld [vmem:[#allocation2] sm:$0xff]
    %v112 = vld [vmem:[#allocation2 + $0x8] sm:$0xff]
    %v113 = vld [vmem:[#allocation2 + $0x10] sm:$0xff]
    %v114 = vld [vmem:[#allocation2 + $0x18] sm:$0xff]
    %v115 = vld [vmem:[#allocation2 + $0x20] sm:$0xff]
    %v116 = vld [vmem:[#allocation2 + $0x28] sm:$0xff]
    %v117 = vld [vmem:[#allocation2 + $0x30] sm:$0xff]
    %v118 = vld [vmem:[#allocation2 + $0x38] sm:$0xff]
    %v119 = vld [vmem:[#allocation2 + $0x40] sm:$0xff]
    %v120 = vld [vmem:[#allocation2 + $0x48] sm:$0xff]
    %v121 = vld [vmem:[#allocation2 + $0x50] sm:$0xff]
    %v122 = vld [vmem:[#allocation2 + $0x58] sm:$0xff]
    %v123 = vld [vmem:[#allocation2 + $0x60] sm:$0xff]
    %v124 = vld [vmem:[#allocation2 + $0x68] sm:$0xff]
    %v125 = vld [vmem:[#allocation2 + $0x70] sm:$0xff]
    %v126 = vld [vmem:[#allocation2 + $0x78] sm:$0xff]
    %v127 = vld [vmem:[#allocation2 + $0x80] sm:$0xff]
    %v128 = vld [vmem:[#allocation2 + $0x88] sm:$0xff]
    %v129 = vld [vmem:[#allocation2 + $0x90] sm:$0xff]
    %v130 = vld [vmem:[#allocation2 + $0x98] sm:$0xff]
    %v131 = vld [vmem:[#allocation2 + $0xa0] sm:$0xff]
    %v132 = vld [vmem:[#allocation2 + $0xa8] sm:$0xff]
    %v133 = vld [vmem:[#allocation2 + $0xb0] sm:$0xff]
    %v134 = vld [vmem:[#allocation2 + $0xb8] sm:$0xff]
    %v135 = vld [vmem:[#allocation2 + $0xc0] sm:$0xff]
    %v136 = vld [vmem:[#allocation2 + $0xc8] sm:$0xff]
    %v137 = vld [vmem:[#allocation2 + $0xd0] sm:$0xff]
    %v138 = vld [vmem:[#allocation2 + $0xd8] sm:$0xff]
    %v139 = vld [vmem:[#allocation2 + $0xe0] sm:$0xff]
    %v140 = vld [vmem:[#allocation2 + $0xe8] sm:$0xff]
    %v141 = vld [vmem:[#allocation2 + $0xf0] sm:$0xff]
    %v142 = vld [vmem:[#allocation2 + $0xf8] sm:$0xff]
    %v175 = vunpack.c.l.b16 %v111
    %v176 = vunpack.c.h.b16 %v111
    %v177 = vunpack.c.l.b16 %v112
    %v178 = vunpack.c.h.b16 %v112
    %v179 = vunpack.c.l.b16 %v113
    %v180 = vunpack.c.h.b16 %v113
    %v181 = vunpack.c.l.b16 %v114
    %v182 = vunpack.c.h.b16 %v114
    %v183 = vunpack.c.l.b16 %v115
    %v184 = vunpack.c.h.b16 %v115
    %v185 = vunpack.c.l.b16 %v116
    %v186 = vunpack.c.h.b16 %v116
    %v187 = vunpack.c.l.b16 %v117
    %v188 = vunpack.c.h.b16 %v117
    %v189 = vunpack.c.l.b16 %v118
    %v190 = vunpack.c.h.b16 %v118
    %v191 = vunpack.c.l.b16 %v119
    %v192 = vunpack.c.h.b16 %v119
    %v193 = vunpack.c.l.b16 %v120
    %v194 = vunpack.c.h.b16 %v120
    %v195 = vunpack.c.l.b16 %v121
    %v196 = vunpack.c.h.b16 %v121
    %v197 = vunpack.c.l.b16 %v122
    %v198 = vunpack.c.h.b16 %v122
    %v199 = vunpack.c.l.b16 %v123
    %v200 = vunpack.c.h.b16 %v123
    %v201 = vunpack.c.l.b16 %v124
    %v202 = vunpack.c.h.b16 %v124
    %v203 = vunpack.c.l.b16 %v125
    %v204 = vunpack.c.h.b16 %v125
    %v205 = vunpack.c.l.b16 %v126
    %v206 = vunpack.c.h.b16 %v126
    %v207 = vunpack.c.l.b16 %v127
    %v208 = vunpack.c.h.b16 %v127
    %v209 = vunpack.c.l.b16 %v128
    %v210 = vunpack.c.h.b16 %v128
    %v211 = vunpack.c.l.b16 %v129
    %v212 = vunpack.c.h.b16 %v129
    %v213 = vunpack.c.l.b16 %v130
    %v214 = vunpack.c.h.b16 %v130
    %v215 = vunpack.c.l.b16 %v131
    %v216 = vunpack.c.h.b16 %v131
    %v217 = vunpack.c.l.b16 %v132
    %v218 = vunpack.c.h.b16 %v132
    %v219 = vunpack.c.l.b16 %v133
    %v220 = vunpack.c.h.b16 %v133
    %v221 = vunpack.c.l.b16 %v134
    %v222 = vunpack.c.h.b16 %v134
    %v223 = vunpack.c.l.b16 %v135
    %v224 = vunpack.c.h.b16 %v135
    %v225 = vunpack.c.l.b16 %v136
    %v226 = vunpack.c.h.b16 %v136
    %v227 = vunpack.c.l.b16 %v137
    %v228 = vunpack.c.h.b16 %v137
    %v229 = vunpack.c.l.b16 %v138
    %v230 = vunpack.c.h.b16 %v138
    %v231 = vunpack.c.l.b16 %v139
    %v232 = vunpack.c.h.b16 %v139
    %v233 = vunpack.c.l.b16 %v140
    %v234 = vunpack.c.h.b16 %v140
    %v235 = vunpack.c.l.b16 %v141
    %v236 = vunpack.c.h.b16 %v141
    %v237 = vunpack.c.l.b16 %v142
    %v238 = vunpack.c.h.b16 %v142
    %v239 = vpack.c.b16 %v177, %v175
    %v240 = vpack.c.b16 %v178, %v176
    %v241 = vpack.c.b16 %v181, %v179
    %v242 = vpack.c.b16 %v182, %v180
    %v243 = vpack.c.b16 %v185, %v183
    %v244 = vpack.c.b16 %v186, %v184
    %v245 = vpack.c.b16 %v189, %v187
    %v246 = vpack.c.b16 %v190, %v188
    %v247 = vpack.c.b16 %v193, %v191
    %v248 = vpack.c.b16 %v194, %v192
    %v249 = vpack.c.b16 %v197, %v195
    %v250 = vpack.c.b16 %v198, %v196
    %v251 = vpack.c.b16 %v201, %v199
    %v252 = vpack.c.b16 %v202, %v200
    %v253 = vpack.c.b16 %v205, %v203
    %v254 = vpack.c.b16 %v206, %v204
    %v255 = vpack.c.b16 %v209, %v207
    %v256 = vpack.c.b16 %v210, %v208
    %v257 = vpack.c.b16 %v213, %v211
    %v258 = vpack.c.b16 %v214, %v212
    %v259 = vpack.c.b16 %v217, %v215
    %v260 = vpack.c.b16 %v218, %v216
    %v261 = vpack.c.b16 %v221, %v219
    %v262 = vpack.c.b16 %v222, %v220
    %v263 = vpack.c.b16 %v225, %v223
    %v264 = vpack.c.b16 %v226, %v224
    %v265 = vpack.c.b16 %v229, %v227
    %v266 = vpack.c.b16 %v230, %v228
    %v267 = vpack.c.b16 %v233, %v231
    %v268 = vpack.c.b16 %v234, %v232
    %v269 = vpack.c.b16 %v237, %v235
    %v270 = vpack.c.b16 %v238, %v236
    %303 = vmatprep.subr.bf16.mxu0 %v240
    %304 = vmatpush1.bf16.msra.mxu0 %v239
    %305 = vmatprep.subr.bf16.mxu0 %v242
    %306 = vmatpush1.bf16.msra.mxu0 %v241
    %307 = vmatprep.subr.bf16.mxu0 %v244
    %308 = vmatpush1.bf16.msra.mxu0 %v243
    %309 = vmatprep.subr.bf16.mxu0 %v246
    %310 = vmatpush1.bf16.msra.mxu0 %v245
    %311 = vmatprep.subr.bf16.mxu0 %v248
    %312 = vmatpush1.bf16.msra.mxu0 %v247
    %313 = vmatprep.subr.bf16.mxu0 %v250
    %314 = vmatpush1.bf16.msra.mxu0 %v249
    %315 = vmatprep.subr.bf16.mxu0 %v252
    %316 = vmatpush1.bf16.msra.mxu0 %v251
    %317 = vmatprep.subr.bf16.mxu0 %v254
    %318 = vmatpush1.bf16.msra.mxu0 %v253
    %319 = vmatprep.subr.bf16.mxu0 %v256
    %320 = vmatpush1.bf16.msra.mxu0 %v255
    %321 = vmatprep.subr.bf16.mxu0 %v258
    %322 = vmatpush1.bf16.msra.mxu0 %v257
    %323 = vmatprep.subr.bf16.mxu0 %v260
    %324 = vmatpush1.bf16.msra.mxu0 %v259
    %325 = vmatprep.subr.bf16.mxu0 %v262
    %326 = vmatpush1.bf16.msra.mxu0 %v261
    %327 = vmatprep.subr.bf16.mxu0 %v264
    %328 = vmatpush1.bf16.msra.mxu0 %v263
    %329 = vmatprep.subr.bf16.mxu0 %v266
    %330 = vmatpush1.bf16.msra.mxu0 %v265
    %331 = vmatprep.subr.bf16.mxu0 %v268
    %332 = vmatpush1.bf16.msra.mxu0 %v267
    %333 = vmatprep.subr.bf16.mxu0 %v270
    %334 = vmatpush1.bf16.msra.mxu0 %v269
    %335 = vmatprep.mubr.bf16.mxu0 %v104
    %336 = vmatmul.mubr.bf16.gmra.mrb[0].mxu0 %v103
    %v337 = vpop.f32.mrb[0].mxu0
    %v338 = vadd.f32 0.0, %v337
    %v339 = vpop.f32.mrb[0].mxu0
    %v340 = vadd.f32 0.0, %v339
    %v341 = vpop.f32.mrb[0].mxu0
    %v342 = vadd.f32 0.0, %v341
    %v343 = vpop.f32.mrb[0].mxu0
    %v344 = vadd.f32 0.0, %v343
    %345 = vmatprep.mubr.bf16.mxu0 %v106
    %346 = vmatmul.mubr.bf16.gmra.mrb[0].mxu0 %v105
    %v347 = vpop.f32.mrb[0].mxu0
    %v348 = vadd.f32 0.0, %v347
    %v349 = vpop.f32.mrb[0].mxu0
    %v350 = vadd.f32 0.0, %v349
    %v351 = vpop.f32.mrb[0].mxu0
    %v352 = vadd.f32 0.0, %v351
    %v353 = vpop.f32.mrb[0].mxu0
    %v354 = vadd.f32 0.0, %v353
    %355 = vmatprep.mubr.bf16.mxu0 %v108
    %356 = vmatmul.mubr.bf16.gmra.mrb[0].mxu0 %v107
    %v357 = vpop.f32.mrb[0].mxu0
    %v358 = vadd.f32 0.0, %v357
    %v359 = vpop.f32.mrb[0].mxu0
    %v360 = vadd.f32 0.0, %v359
    %v361 = vpop.f32.mrb[0].mxu0
    %v362 = vadd.f32 0.0, %v361
    %v363 = vpop.f32.mrb[0].mxu0
    %v364 = vadd.f32 0.0, %v363
    %365 = vmatprep.mubr.bf16.mxu0 %v110
    %366 = vmatmul.mubr.bf16.gmra.mrb[0].mxu0 %v109
    %v367 = vpop.f32.mrb[0].mxu0
    %v368 = vadd.f32 0.0, %v367
    %v369 = vpop.f32.mrb[0].mxu0
    %v370 = vadd.f32 0.0, %v369
    %v371 = vpop.f32.mrb[0].mxu0
    %v372 = vadd.f32 0.0, %v371
    %v373 = vpop.f32.mrb[0].mxu0
    %v374 = vadd.f32 0.0, %v373
    %375 = vdwg.mxu0
    %376 = vst [vmem:[%s4] sm:$0xff] %v338
    %377 = vst [vmem:[%s4 + $0x8] sm:$0xff] %v340
    %378 = vst [vmem:[%s4 + $0x10] sm:$0xff] %v342
    %379 = vst [vmem:[%s4 + $0x18] sm:$0xff] %v344
    %380 = vst [vmem:[%s4 + $0x20] sm:$0xff] %v348
    %381 = vst [vmem:[%s4 + $0x28] sm:$0xff] %v350
    %382 = vst [vmem:[%s4 + $0x30] sm:$0xff] %v352
    %383 = vst [vmem:[%s4 + $0x38] sm:$0xff] %v354
    %384 = vst [vmem:[%s4 + $0x40] sm:$0xff] %v358
    %385 = vst [vmem:[%s4 + $0x48] sm:$0xff] %v360
    %386 = vst [vmem:[%s4 + $0x50] sm:$0xff] %v362
    %387 = vst [vmem:[%s4 + $0x58] sm:$0xff] %v364
    %388 = vst [vmem:[%s4 + $0x60] sm:$0xff] %v368
    %389 = vst [vmem:[%s4 + $0x68] sm:$0xff] %v370
    %390 = vst [vmem:[%s4 + $0x70] sm:$0xff] %v372
    %391 = vst [vmem:[%s4 + $0x78] sm:$0xff] %v374
    // Predicated region
    $region22: #{bn_classifier_forward.3} parent=1 // pred_check
      _
    $region23: #{bn_classifier_forward.3} parent=1 // pred_check_branch
      %393 = sbr.rel (0) target = $region25
    $region24: #{bn_classifier_forward.3} parent=1 // pred_region
      _
    $region25: #{bn_classifier_forward.3} parent=1 // pred_fallthru
      _
    // Predicated region
    $region26: #{bn_classifier_forward.3} parent=1 // pred_check
      _
    $region27: #{bn_classifier_forward.3} parent=1 // pred_check_branch
      %395 = sbr.rel (0) target = $region29
    $region28: #{bn_classifier_forward.3} parent=1 // pred_region
      _
    $region29: #{bn_classifier_forward.3} parent=1 // pred_fallthru
      _
    %396 = vsyncpa [#allocation3], 1

</llo_original>
